<compile_context>
chip_gen: v6e
topology: v6e:2x2x1
jax: 0.10.0
libtpu: 0.0.40
codegen_flags: <defaults>
</compile_context>

<pallas_src>
import functools
import math

import jax
import jax.numpy as jnp
import numpy as np
from jax.experimental import pallas as pl
from jax.experimental.pallas import tpu as pltpu


# -----------------------------------------------------------------------------
# Stage 1: deterministic cumsums (+ optional normalization) of the not-mask.
# One grid step per batch element.  All of this is O(H*W) work -- a factor
# 2*num_pos_feats smaller than stage 2 -- so a single full-(H, W) block per
# step is plenty.
# -----------------------------------------------------------------------------
def _cumsum_kernel(nm_ref, ly_ref, rx_ref, y_ref, x_ref, *, normalize, scale):
    H, W = nm_ref.shape
    nm = nm_ref[...]                                          # (H, W) bf16, 0/1

    # "deterministic" cumsum (out[0] == 0) expressed as small MXU matmuls.
    # bf16 operands are exact for 0/1 data; accumulation is f32.
    y = jnp.dot(ly_ref[...], nm, preferred_element_type=jnp.float32)  # (H, W)
    x = jnp.dot(nm, rx_ref[...], preferred_element_type=jnp.float32)  # (H, W)

    if normalize:
        eps = 1e-6
        y_last = y[H - 1:H, :]                                # (1, W)
        x_last = x[:, W - 1:W]                                # (H, 1)
        # Invert the small denominators once, apply as broadcast multiplies.
        y = (y - 0.5) * (scale / (y_last + eps))
        x = (x - 0.5) * (scale / (x_last + eps))

    y_ref[...] = y
    x_ref[...] = x


# -----------------------------------------------------------------------------
# Stage 2: sin/cos embedding over the flat spatial axis, lane-dense stores.
# -----------------------------------------------------------------------------
def _sincos_kernel(y_ref, x_ref, inv_ref, ph_ref, o_ref, *, num_pos_feats):
    F = num_pos_feats
    inv = inv_ref[...]                                        # (F, 1) 1/dim_t
    ph = ph_ref[...]                                          # (F, 1) 0 / pi/2
    y = y_ref[...]                                            # (1, TILE)
    x = x_ref[...]                                            # (1, TILE)
    # Even channels want sin(emb / dim_t), odd channels cos of the SAME angle;
    # cos is folded in as sin(angle + pi/2) -> one transcendental per output
    # element and two bulk lane-dense stores per half.
    o_ref[0:F, :] = jnp.sin(y * inv + ph)
    o_ref[F:2 * F, :] = jnp.sin(x * inv + ph)


# -----------------------------------------------------------------------------
# Generation-aware tiling helpers.
# -----------------------------------------------------------------------------
def _vmem_limit_bytes():
    cap = 64 * 1024 * 1024            # conservative default (v7x per-core VMEM)
    try:
        cap = int(getattr(pltpu.get_tpu_info(), "vmem_capacity_bytes", cap))
    except Exception:
        pass
    # Request ~half the physical VMEM as the scoped limit: ~64 MiB on the
    # 128 MiB parts (v5e/v6e), 32 MiB on v7x.
    return max(16 * 1024 * 1024, min(cap // 2, 96 * 1024 * 1024))


def _choose_spatial_tile(S, N, C, budget_bytes, min_steps=2):
    """Pick the flat spatial tile for stage 2.

    Returns (tile, divides): if `divides` the tile divides S exactly,
    otherwise the caller pads the flat spatial axis up to a tile multiple.
    """
    def footprint(t):
        out_bufs = 2 * C * t * 4        # double-buffered output block
        interm = 2 * C * t * 4          # angle + sin intermediates (conservative)
        in_bufs = 2 * 2 * t * 4         # y/x input blocks, double-buffered
        return out_bufs + interm + in_bufs

    cands = sorted({S} | {d for d in range(128, S, 128) if S % d == 0})
    fitting = [t for t in cands if footprint(t) <= budget_bytes]
    if not fitting:
        # No divisor-aligned tile fits the budget: fall back to a lane-dense
        # tile that does not divide S; the wrapper pads the spatial axis.
        per_elem = 4 * C * 4 + 16
        t = max(128, (budget_bytes // per_elem) // 128 * 128)
        return t, False
    # Prefer tiles that keep >= min_steps grid steps so v7x's two TensorCores
    # both get work (ideally 2*num_cores; 2 is the portable choice).
    preferred = [t for t in fitting if N * ((S + t - 1) // t) >= min_steps]
    pool = preferred if preferred else fitting
    return max(pool), True


# -----------------------------------------------------------------------------
# Wrapper.
# -----------------------------------------------------------------------------
def position_embedding_sine(mask, num_pos_feats=64, temperature=10000,
                            normalize=False, scale=None):
    """mask: (N, H, W) bool (True == padded).
    Returns pos: (N, 2*num_pos_feats, H, W) float32."""
    if scale is not None and normalize is False:
        raise ValueError("normalize should be True if scale is passed")
    if scale is None:
        scale = 2 * math.pi
    if num_pos_feats % 2 != 0:
        raise ValueError("num_pos_feats must be even")

    N, H, W = mask.shape
    F = num_pos_feats
    C = 2 * F
    S = H * W
    vmem_limit = _vmem_limit_bytes()

    not_mask = (~mask).astype(jnp.bfloat16)

    # Triangular 0/1 matrices implementing the "deterministic" cumsum
    # (accumulation starts at index 1, so out[0] == 0).  Built once, bf16.
    ly = np.tril(np.ones((H, H), dtype=np.float32))
    ly[:, 0] = 0.0
    rx = np.triu(np.ones((W, W), dtype=np.float32))
    rx[0, :] = 0.0
    ly = jnp.asarray(ly, dtype=jnp.bfloat16)
    rx = jnp.asarray(rx, dtype=jnp.bfloat16)

    # ---- stage 1: per-batch cumsums + normalization --------------------------
    # TODO(synk): row-tile this stage too if H, W ever reach ~1000 (the (H, H)
    # matrix would then dominate its VMEM footprint); irrelevant at backbone
    # feature-map sizes.
    y_embed, x_embed = pl.pallas_call(
        functools.partial(_cumsum_kernel, normalize=normalize,
                          scale=float(scale)),
        out_shape=(jax.ShapeDtypeStruct((N, H, W), jnp.float32),
                   jax.ShapeDtypeStruct((N, H, W), jnp.float32)),
        grid=(N,),
        in_specs=[
            pl.BlockSpec((None, H, W), lambda b: (b, 0, 0)),   # not_mask
            pl.BlockSpec((H, H), lambda b: (0, 0)),            # l_y (resident)
            pl.BlockSpec((W, W), lambda b: (0, 0)),            # r_x (resident)
        ],
        out_specs=[
            pl.BlockSpec((None, H, W), lambda b: (b, 0, 0)),
            pl.BlockSpec((None, H, W), lambda b: (b, 0, 0)),
        ],
        compiler_params=pltpu.CompilerParams(
            dimension_semantics=("parallel",),
            vmem_limit_bytes=vmem_limit),
    )(not_mask, ly, rx)

    # Free row-major views of the stage-1 outputs: (N, H, W) -> (N, 1, H*W).
    yf = y_embed.reshape(N, 1, S)
    xf = x_embed.reshape(N, 1, S)

    # 1 / dim_t and the sin/cos phase per output channel, computed once at
    # trace time in float64 (dim_t[2k] == dim_t[2k+1]; cos(a) == sin(a+pi/2)).
    idx = np.arange(F)
    inv_np = np.power(np.float64(temperature),
                      -2.0 * (idx // 2) / F).astype(np.float32)
    ph_np = (0.5 * np.pi * (idx % 2)).astype(np.float32)
    inv = jnp.asarray(inv_np.reshape(F, 1))
    ph = jnp.asarray(ph_np.reshape(F, 1))

    # ---- stage 2: lane-dense sin/cos embedding over the flat spatial axis ----
    TILE, divides = _choose_spatial_tile(S, N, C, (vmem_limit * 3) // 4)
    if divides:
        S_pad = S
    else:
        S_pad = ((S + TILE - 1) // TILE) * TILE
        pad = ((0, 0), (0, 0), (0, S_pad - S))
        yf = jnp.pad(yf, pad)
        xf = jnp.pad(xf, pad)

    grid = (N, S_pad // TILE)
    out_flat = pl.pallas_call(
        functools.partial(_sincos_kernel, num_pos_feats=F),
        out_shape=jax.ShapeDtypeStruct((N, C, S_pad), jnp.float32),
        grid=grid,
        in_specs=[
            pl.BlockSpec((None, 1, TILE), lambda b, t: (b, 0, t)),  # y_embed
            pl.BlockSpec((None, 1, TILE), lambda b, t: (b, 0, t)),  # x_embed
            pl.BlockSpec((F, 1), lambda b, t: (0, 0)),              # 1/dim_t
            pl.BlockSpec((F, 1), lambda b, t: (0, 0)),              # phase
        ],
        out_specs=pl.BlockSpec((None, C, TILE), lambda b, t: (b, 0, t)),
        compiler_params=pltpu.CompilerParams(
            dimension_semantics=("parallel", "parallel"),
            vmem_limit_bytes=vmem_limit),
    )(yf, xf, inv, ph)

    if S_pad != S:
        out_flat = out_flat[:, :, :S]
    # Free reshape of the NCHW buffer (H*W is the contiguous minor axis).
    return out_flat.reshape(N, C, H, W)
    # TODO(synk): emit bf16 output (halves HBM writeback) if downstream
    # consumers of the positional encoding accept it; kept f32 to match the
    # PyTorch module.


# -----------------------------------------------------------------------------
# Pure-JAX reference mirroring the PyTorch forward (for self-check).
# -----------------------------------------------------------------------------
def _reference(mask, num_pos_feats=64, temperature=10000, normalize=False,
               scale=None):
    if scale is None:
        scale = 2 * math.pi
    nm = (~mask).astype(jnp.float32)
    # deterministic_cumsum: cumsum minus the first slice (out[0] == 0).
    y_embed = jnp.cumsum(nm, axis=1) - nm[:, 0:1, :]
    x_embed = jnp.cumsum(nm, axis=2) - nm[:, :, 0:1]
    if normalize:
        eps = 1e-6
        y_embed = (y_embed - 0.5) / (y_embed[:, -1:, :] + eps) * scale
        x_embed = (x_embed - 0.5) / (x_embed[:, :, -1:] + eps) * scale
    dim_t = jnp.arange(num_pos_feats, dtype=jnp.float32)
    dim_t = temperature ** (2 * jnp.floor(dim_t / 2) / num_pos_feats)
    pos_x = x_embed[..., None] / dim_t
    pos_y = y_embed[..., None] / dim_t
    N, H, W = mask.shape
    pos_x = jnp.stack((jnp.sin(pos_x[..., 0::2]), jnp.cos(pos_x[..., 1::2])),
                      axis=4).reshape(N, H, W, -1)
    pos_y = jnp.stack((jnp.sin(pos_y[..., 0::2]), jnp.cos(pos_y[..., 1::2])),
                      axis=4).reshape(N, H, W, -1)
    pos = jnp.concatenate((pos_y, pos_x), axis=3)
    return jnp.transpose(pos, (0, 3, 1, 2))


if __name__ == "__main__":
    key = jax.random.PRNGKey(0)
    N, C_in, H, W = 2, 4, 16, 16

    # x is only used for device/dtype in the original module; mask drives compute.
    x = jax.random.normal(key, (N, C_in, H, W), dtype=jnp.float32)

    # Deterministic padding-style mask (True == padded), like NestedTensor masks.
    valid_h = jnp.array([16, 12])
    valid_w = jnp.array([16, 10])
    hh = jnp.arange(H)[None, :, None]
    ww = jnp.arange(W)[None, None, :]
    mask = (hh >= valid_h[:, None, None]) | (ww >= valid_w[:, None, None])

    # Case 1: default config (normalize=False) with a padded mask.
    pos = position_embedding_sine(mask, num_pos_feats=64, temperature=10000,
                                  normalize=False)
    pos = jax.block_until_ready(pos)
    assert pos.shape == (N, 128, H, W), pos.shape
    ref = _reference(mask, num_pos_feats=64, temperature=10000, normalize=False)
    np.testing.assert_allclose(np.asarray(pos), np.asarray(ref),
                               rtol=1e-3, atol=1e-3)

    # Case 2: normalize=True path (unpadded mask keeps the angles
    # well-conditioned; fully-masked rows/columns are degenerate by design).
    mask2 = jnp.zeros((N, H, W), dtype=bool)
    pos2 = jax.block_until_ready(
        position_embedding_sine(mask2, num_pos_feats=64, temperature=10000,
                                normalize=True))
    ref2 = _reference(mask2, num_pos_feats=64, temperature=10000,
                      normalize=True)
    np.testing.assert_allclose(np.asarray(pos2), np.asarray(ref2),
                               rtol=1e-3, atol=1e-3)

    print("KERNEL_OK")
</pallas_src>

<mosaic_0001>
module attributes {stable_mosaic.version = 11 : i64} {
  func.func @_cumsum_kernel(%arg0: i32, %arg1: memref<1x16x16xbf16, #tpu.memory_space<vmem>>, %arg2: memref<16x16xbf16, #tpu.memory_space<vmem>>, %arg3: memref<16x16xbf16, #tpu.memory_space<vmem>>, %arg4: memref<1x16x16xf32, #tpu.memory_space<vmem>>, %arg5: memref<1x16x16xf32, #tpu.memory_space<vmem>>) attributes {dimension_semantics = [#tpu.dimension_semantics<parallel>], iteration_bounds = array<i64: 2>, scalar_prefetch = 0 : i64, scratch_operands = 0 : i64, tpu.core_type = #tpu.core_type<tc>, window_params = [{transform_indices = @transform_0, window_bounds = array<i64: 1, 16, 16>}, {pipeline_mode = #tpu.pipeline_mode<synchronous>, transform_indices = @transform_1, window_bounds = array<i64: 16, 16>}, {pipeline_mode = #tpu.pipeline_mode<synchronous>, transform_indices = @transform_2, window_bounds = array<i64: 16, 16>}, {transform_indices = @transform_3, window_bounds = array<i64: 1, 16, 16>}, {transform_indices = @transform_4, window_bounds = array<i64: 1, 16, 16>}]} {
    %c0 = arith.constant 0 : index
    %c0_0 = arith.constant 0 : index
    %c0_1 = arith.constant 0 : index
    %0 = vector.load %arg1[%c0, %c0_0, %c0_1] : memref<1x16x16xbf16, #tpu.memory_space<vmem>>, vector<1x16x16xbf16>
    %1 = vector.shape_cast %0 : vector<1x16x16xbf16> to vector<16x16xbf16>
    %c0_2 = arith.constant 0 : index
    %c0_3 = arith.constant 0 : index
    %2 = vector.load %arg2[%c0_2, %c0_3] : memref<16x16xbf16, #tpu.memory_space<vmem>>, vector<16x16xbf16>
    %cst = arith.constant dense<0.000000e+00> : vector<16x16xf32>
    %3 = tpu.matmul %2, %1, %cst {dimension_numbers = #tpu.dot_dimension_numbers<[1], [0], [0], [1], [0, 0, 1, 1], [], []>} : vector<16x16xbf16>, vector<16x16xbf16>, vector<16x16xf32> -> vector<16x16xf32>
    %c0_4 = arith.constant 0 : index
    %c0_5 = arith.constant 0 : index
    %4 = vector.load %arg3[%c0_4, %c0_5] : memref<16x16xbf16, #tpu.memory_space<vmem>>, vector<16x16xbf16>
    %cst_6 = arith.constant dense<0.000000e+00> : vector<16x16xf32>
    %5 = tpu.matmul %1, %4, %cst_6 {dimension_numbers = #tpu.dot_dimension_numbers<[1], [0], [0], [1], [0, 0, 1, 1], [], []>} : vector<16x16xbf16>, vector<16x16xbf16>, vector<16x16xf32> -> vector<16x16xf32>
    %c0_7 = arith.constant 0 : index
    %c0_8 = arith.constant 0 : index
    %c0_9 = arith.constant 0 : index
    %6 = vector.load %arg4[%c0_7, %c0_8, %c0_9] : memref<1x16x16xf32, #tpu.memory_space<vmem>>, vector<1x16x16xf32>
    %7 = vector.shape_cast %6 : vector<1x16x16xf32> to vector<16x16xf32>
    %8 = vector.shape_cast %3 : vector<16x16xf32> to vector<1x16x16xf32>
    tpu.vector_store %arg4[%c0_7, %c0_8, %c0_9], %8 {strides = array<i32>} : memref<1x16x16xf32, #tpu.memory_space<vmem>>, vector<1x16x16xf32>,
    %c0_10 = arith.constant 0 : index
    %c0_11 = arith.constant 0 : index
    %c0_12 = arith.constant 0 : index
    %9 = vector.load %arg5[%c0_10, %c0_11, %c0_12] : memref<1x16x16xf32, #tpu.memory_space<vmem>>, vector<1x16x16xf32>
    %10 = vector.shape_cast %9 : vector<1x16x16xf32> to vector<16x16xf32>
    %11 = vector.shape_cast %5 : vector<16x16xf32> to vector<1x16x16xf32>
    tpu.vector_store %arg5[%c0_10, %c0_11, %c0_12], %11 {strides = array<i32>} : memref<1x16x16xf32, #tpu.memory_space<vmem>>, vector<1x16x16xf32>,
    return
  }
  func.func @transform_0(%arg0: i32) -> (i32, i32, i32) {
    %c0_i32 = arith.constant 0 : i32
    %c0_i32_0 = arith.constant 0 : i32
    %c0_i32_1 = arith.constant 0 : i32
    return %arg0, %c0_i32, %c0_i32_0 : i32, i32, i32
  }
  func.func @transform_1(%arg0: i32) -> (i32, i32) {
    %c0_i32 = arith.constant 0 : i32
    %c0_i32_0 = arith.constant 0 : i32
    %c0_i32_1 = arith.constant 0 : i32
    return %c0_i32, %c0_i32_0 : i32, i32
  }
  func.func @transform_2(%arg0: i32) -> (i32, i32) {
    %c0_i32 = arith.constant 0 : i32
    %c0_i32_0 = arith.constant 0 : i32
    %c0_i32_1 = arith.constant 0 : i32
    return %c0_i32, %c0_i32_0 : i32, i32
  }
  func.func @transform_3(%arg0: i32) -> (i32, i32, i32) {
    %c0_i32 = arith.constant 0 : i32
    %c0_i32_0 = arith.constant 0 : i32
    %c0_i32_1 = arith.constant 0 : i32
    return %arg0, %c0_i32, %c0_i32_0 : i32, i32, i32
  }
  func.func @transform_4(%arg0: i32) -> (i32, i32, i32) {
    %c0_i32 = arith.constant 0 : i32
    %c0_i32_0 = arith.constant 0 : i32
    %c0_i32_1 = arith.constant 0 : i32
    return %arg0, %c0_i32, %c0_i32_0 : i32, i32, i32
  }
}

</mosaic_0001>

<llo_original>
// kernel: tpu_custom_call.1
$region0: #{tpu_custom_call.1}
  #allocation0 [shape = 'u32[]', space=smem, size = 0x4, offset = 0x4, fixed_abs, tag = 'smem constant byte address 0x4 - core index']
  #allocation1 [shape = 'u32[144,128]{1,0:T(1,128)}', space=vmem, size = 0x12000, scoped, tag = 'internal scratch']
  %s0 = inlined_call_operand.hbm [shape: bf16[2,16,16], index: 0, kind: input, shape index: {}]
  %s1 = inlined_call_operand.hbm [shape: bf16[16,16], index: 1, kind: input, shape index: {}]
  %s2 = inlined_call_operand.hbm [shape: bf16[16,16], index: 2, kind: input, shape index: {}]
  %s3 = inlined_call_operand.hbm [shape: f32[2,16,16], index: 3, kind: output, shape index: {0}]
  %s4 = inlined_call_operand.hbm [shape: f32[2,16,16], index: 4, kind: output, shape index: {1}]
  %5 = xla_tuple %s3, %s4
  %s6 = sld [smem:[#allocation0]]
  $region65: #{tpu_custom_call.1} parent=0
    _
  %s8 = ssub.s32 1, %s6
  %s9 = scalar_select 0, %s8, %s6
  $region1: #{tpu_custom_call.1} parent=0
    #allocation2 [shape = 'u8[8192]{0}', space=vmem, size = 0x2000, scoped, tag = 'input window, operand 0']
    #allocation3 [shape = 's32[2]{0}', space=sflag, size = 0x8, scoped, tag = 'scoped memory for tpu_custom_call.1']
    #allocation4 [shape = 's32[2]{0}', space=sflag, size = 0x8, scoped, tag = 'scoped memory for tpu_custom_call.1']
    #allocation5 [shape = 'u8[4096]{0}', space=vmem, size = 0x1000, scoped, tag = 'input window, operand 1, single buffered']
    #allocation6 [shape = 's32[1]{0}', space=sflag, size = 0x4, scoped, tag = 'scoped memory for tpu_custom_call.1']
    #allocation7 [shape = 'u8[4096]{0}', space=vmem, size = 0x1000, scoped, tag = 'input window, operand 2, single buffered']
    #allocation8 [shape = 'u8[16384]{0}', space=vmem, size = 0x4000, scoped, tag = 'output window, operand 0']
    #allocation9 [shape = 'u8[16384]{0}', space=vmem, size = 0x4000, scoped, tag = 'output window, operand 1']
    #allocation10 [shape = 's32[2]{0}', space=sflag, size = 0x8, scoped, tag = 'scoped memory for tpu_custom_call.1']
    %10 = vsyncpa [#allocation3], 0
    %s11 = scalar_lea.sflag [#allocation3], 1
    %12 = vsyncpa %s11, 0
    %13 = vsyncpa [#allocation6], 0
    %14 = vsyncpa [#allocation4], 0
    %s15 = scalar_lea.sflag [#allocation4], 1
    %16 = vsyncpa %s15, 0
    %17 = vsyncpa [#allocation10], 0
    %s18 = scalar_lea.sflag [#allocation10], 1
    %19 = vsyncpa %s18, 0
    loop: start=0, step=1, limit=4
    $region2: #{tpu_custom_call.1} parent=1 // loop_pre_header
      _
    $region3: #{tpu_custom_call.1} parent=1 // loop_header
      %s21 = sphi 0, %s25
      %p22 = scmp.ge.s32.totalorder %s21, 4
      %s31 = sphi 0, %s33
      %s34 = sphi 0, %s31
      %s35 = sphi 0, %s34
      %s51 = sphi 0, %s35
      %s55 = sphi 0, %s55
      %s57 = sphi 0, %s55
      %s58 = sphi 0, %s57
      %s72 = sphi 0, %s58
      %s76 = sphi 0, %s76
      %s78 = sphi 0, %s76
      %s79 = sphi 0, %s78
      %s93 = sphi 0, %s79
      %s99 = sphi 0, %s101
      %s102 = sphi 0, %s99
      %s103 = sphi 0, %s102
      %s119 = sphi 0, %s103
      %s125 = sphi 0, %s127
      %s128 = sphi 0, %s125
      %s129 = sphi 0, %s128
      %s145 = sphi 0, %s129
    $region4: #{tpu_custom_call.1} parent=1 // loop_header_branch
      %24 = sbr.rel (%p22) target = $region8
    $region5: #{tpu_custom_call.1} parent=1 // loop_body
      %s26 = ssub.s32 %s21, 1
      %s27 = ssub.s32 %s21, 2
      %s28 = sadd.s32 %s21, 1
      %s29 = ssub.s32 %s21, %s28
      %p30 = scmp.eq.s32.totalorder %s29, 0
      %s32 = sadd.s32 %s31, 1
      %s33 = scalar_select %p30, %s31, %s32
      %p36 = pneg %p30
      %p37 = scmp.eq.s32.totalorder %s21, 1
      %p38 = por %p36, %p37
      %p39 = scmp.ne.s32.totalorder %s31, %s34
      %p40 = scmp.eq.s32.totalorder %s21, 0
      %p41 = por %p39, %p40
      %p42 = scmp.ne.s32.totalorder %s31, %s34
      %p43 = scmp.eq.s32.totalorder %s26, 1
      %p44 = por %p42, %p43
      %p45 = scmp.ne.s32.totalorder %s34, %s35
      %p46 = scmp.eq.s32.totalorder %s26, 0
      %p47 = por %p45, %p46
      %p48 = scmp.ne.s32.totalorder %s34, %s35
      %p49 = scmp.eq.s32.totalorder %s27, 1
      %p50 = por %p48, %p49
      %p52 = scmp.ne.s32.totalorder %s35, %s51
      %p53 = scmp.eq.s32.totalorder %s27, 0
      %p54 = por %p52, %p53
      %s56 = sadd.s32 %s55, 1
      %p59 = scmp.eq.s32.totalorder %s21, 1
      %p60 = scmp.ne.s32.totalorder %s55, %s57
      %p61 = scmp.eq.s32.totalorder %s21, 0
      %p62 = por %p60, %p61
      %p63 = scmp.ne.s32.totalorder %s55, %s57
      %p64 = scmp.eq.s32.totalorder %s26, 1
      %p65 = por %p63, %p64
      %p66 = scmp.ne.s32.totalorder %s57, %s58
      %p67 = scmp.eq.s32.totalorder %s26, 0
      %p68 = por %p66, %p67
      %p69 = scmp.ne.s32.totalorder %s57, %s58
      %p70 = scmp.eq.s32.totalorder %s27, 1
      %p71 = por %p69, %p70
      %p73 = scmp.ne.s32.totalorder %s58, %s72
      %p74 = scmp.eq.s32.totalorder %s27, 0
      %p75 = por %p73, %p74
      %s77 = sadd.s32 %s76, 1
      %p80 = scmp.eq.s32.totalorder %s21, 1
      %p81 = scmp.ne.s32.totalorder %s76, %s78
      %p82 = scmp.eq.s32.totalorder %s21, 0
      %p83 = por %p81, %p82
      %p84 = scmp.ne.s32.totalorder %s76, %s78
      %p85 = scmp.eq.s32.totalorder %s26, 1
      %p86 = por %p84, %p85
      %p87 = scmp.ne.s32.totalorder %s78, %s79
      %p88 = scmp.eq.s32.totalorder %s26, 0
      %p89 = por %p87, %p88
      %p90 = scmp.ne.s32.totalorder %s78, %s79
      %p91 = scmp.eq.s32.totalorder %s27, 1
      %p92 = por %p90, %p91
      %p94 = scmp.ne.s32.totalorder %s79, %s93
      %p95 = scmp.eq.s32.totalorder %s27, 0
      %p96 = por %p94, %p95
      %s97 = ssub.s32 %s21, %s28
      %p98 = scmp.eq.s32.totalorder %s97, 0
      %s100 = sadd.s32 %s99, 1
      %s101 = scalar_select %p98, %s99, %s100
      %p104 = pneg %p98
      %p105 = scmp.eq.s32.totalorder %s21, 1
      %p106 = por %p104, %p105
      %p107 = scmp.ne.s32.totalorder %s99, %s102
      %p108 = scmp.eq.s32.totalorder %s21, 0
      %p109 = por %p107, %p108
      %p110 = scmp.ne.s32.totalorder %s99, %s102
      %p111 = scmp.eq.s32.totalorder %s26, 1
      %p112 = por %p110, %p111
      %p113 = scmp.ne.s32.totalorder %s102, %s103
      %p114 = scmp.eq.s32.totalorder %s26, 0
      %p115 = por %p113, %p114
      %p116 = scmp.ne.s32.totalorder %s102, %s103
      %p117 = scmp.eq.s32.totalorder %s27, 1
      %p118 = por %p116, %p117
      %p120 = scmp.ne.s32.totalorder %s103, %s119
      %p121 = scmp.eq.s32.totalorder %s27, 0
      %p122 = por %p120, %p121
      %s123 = ssub.s32 %s21, %s28
      %p124 = scmp.eq.s32.totalorder %s123, 0
      %s126 = sadd.s32 %s125, 1
      %s127 = scalar_select %p124, %s125, %s126
      %p130 = pneg %p124
      %p131 = scmp.eq.s32.totalorder %s21, 1
      %p132 = por %p130, %p131
      %p133 = scmp.ne.s32.totalorder %s125, %s128
      %p134 = scmp.eq.s32.totalorder %s21, 0
      %p135 = por %p133, %p134
      %p136 = scmp.ne.s32.totalorder %s125, %s128
      %p137 = scmp.eq.s32.totalorder %s26, 1
      %p138 = por %p136, %p137
      %p139 = scmp.ne.s32.totalorder %s128, %s129
      %p140 = scmp.eq.s32.totalorder %s26, 0
      %p141 = por %p139, %p140
      %p142 = scmp.ne.s32.totalorder %s128, %s129
      %p143 = scmp.eq.s32.totalorder %s27, 1
      %p144 = por %p142, %p143
      %p146 = scmp.ne.s32.totalorder %s129, %s145
      %p147 = scmp.eq.s32.totalorder %s27, 0
      %p148 = por %p146, %p147
      %p149 = scmp.le.s32.totalorder 1, %s21
      %p150 = scmp.lt.s32.totalorder %s21, 3
      %p151 = pnand %p149, %p150
      %p152 = pneg %p151
      // Predicated region
      $region9: #{tpu_custom_call.1} parent=5 // pred_check
        _
      $region10: #{tpu_custom_call.1} parent=5 // pred_check_branch
        %154 = sbr.rel (%p151) target = $region12
      $region11: #{tpu_custom_call.1} parent=5 // pred_region
        %s155 = ssub.s32 %s21, 1
        // Predicated region
        $region13: #{tpu_custom_call.1} parent=11 // pred_check
          %p156 = pneg %p68
        $region14: #{tpu_custom_call.1} parent=11 // pred_check_branch
          %158 = sbr.rel (%p156) target = $region16
        $region15: #{tpu_custom_call.1} parent=11 // pred_region
          %s160 = ssub.s32 128, 128
          %161 = vsyncadd [#allocation6], %s160
          %s162 = sshll.u32 [#allocation5], 4
          %s163 = int_to_ptr.vmem [resolvable:$true] %s162
          %168 = dma.hbm_to_vmem [thread:$0]  %s1, 128, %s163, [#allocation6], 64, 64, 4
        $region16: #{tpu_custom_call.1} parent=11 // pred_fallthru
          _
        // Predicated region
        $region17: #{tpu_custom_call.1} parent=11 // pred_check
          %p169 = pneg %p89
        $region18: #{tpu_custom_call.1} parent=11 // pred_check_branch
          %171 = sbr.rel (%p169) target = $region20
        $region19: #{tpu_custom_call.1} parent=11 // pred_region
          %s173 = ssub.s32 128, 128
          %174 = vsyncadd [#allocation6], %s173
          %s175 = sshll.u32 [#allocation7], 4
          %s176 = int_to_ptr.vmem [resolvable:$true] %s175
          %181 = dma.hbm_to_vmem [thread:$0]  %s2, 128, %s176, [#allocation6], 64, 64, 4
        $region20: #{tpu_custom_call.1} parent=11 // pred_fallthru
          _
      $region12: #{tpu_custom_call.1} parent=5 // pred_fallthru
        _
      %p182 = scmp.lt.s32.totalorder %s21, 2
      // Predicated region
      $region21: #{tpu_custom_call.1} parent=5 // pred_check
        %p183 = pneg %p182
      $region22: #{tpu_custom_call.1} parent=5 // pred_check_branch
        %185 = sbr.rel (%p183) target = $region24
      $region23: #{tpu_custom_call.1} parent=5 // pred_region
        // Predicated region
        $region25: #{tpu_custom_call.1} parent=23 // pred_check
          %p186 = pneg %p41
        $region26: #{tpu_custom_call.1} parent=23 // pred_check_branch
          %188 = sbr.rel (%p186) target = $region28
        $region27: #{tpu_custom_call.1} parent=23 // pred_region
          %s189 = sand.u32 %s31, 1
          %s190 = scalar_lea.sflag [#allocation3], %s189
          %s191 = sand.u32 %s31, 1
          %s192 = smul.addr %s191, 8
          %s193 = scalar_lea.vmem [#allocation2], %s192
          %s195 = ssub.s32 128, 128
          %196 = vsyncadd %s190, %s195
          %s197 = smul.addr %s21, 2
          %s198 = smul.addr %s197, 64
          %s199 = scalar_lea.hbm %s0, %s198
          %s200 = sshll.u32 %s193, 4
          %s201 = int_to_ptr.vmem [resolvable:$true] %s200
          %206 = dma.hbm_to_vmem [thread:$0]  %s199, 128, %s201, %s190, 64, 64, 4
        $region28: #{tpu_custom_call.1} parent=23 // pred_fallthru
          _
      $region24: #{tpu_custom_call.1} parent=5 // pred_fallthru
        _
      %p207 = scmp.le.s32.totalorder 1, %s21
      %p208 = scmp.lt.s32.totalorder %s21, 3
      %p209 = pnand %p207, %p208
      %p210 = pneg %p209
      // Predicated region
      $region29: #{tpu_custom_call.1} parent=5 // pred_check
        _
      $region30: #{tpu_custom_call.1} parent=5 // pred_check_branch
        %212 = sbr.rel (%p209) target = $region32
      $region31: #{tpu_custom_call.1} parent=5 // pred_region
        %s213 = ssub.s32 %s21, 1
        %s214 = sand.u32 %s34, 1
        %s215 = scalar_lea.sflag [#allocation3], %s214
        %s216 = sand.u32 %s34, 1
        %s217 = smul.addr %s216, 8
        %s218 = scalar_lea.vmem [#allocation2], %s217
        // Predicated region
        $region33: #{tpu_custom_call.1} parent=31 // pred_check
          %p219 = pneg %p47
        $region34: #{tpu_custom_call.1} parent=31 // pred_check_branch
          %221 = sbr.rel (%p219) target = $region36
        $region35: #{tpu_custom_call.1} parent=31 // pred_region
          %222 = dma.done %s215, 128
        $region36: #{tpu_custom_call.1} parent=31 // pred_fallthru
          _
        // Predicated region
        $region37: #{tpu_custom_call.1} parent=31 // pred_check
          %p223 = pneg %p68
        $region38: #{tpu_custom_call.1} parent=31 // pred_check_branch
          %225 = sbr.rel (%p223) target = $region40
        $region39: #{tpu_custom_call.1} parent=31 // pred_region
          %226 = dma.done [#allocation6], 128
        $region40: #{tpu_custom_call.1} parent=31 // pred_fallthru
          _
        // Predicated region
        $region41: #{tpu_custom_call.1} parent=31 // pred_check
          %p227 = pneg %p89
        $region42: #{tpu_custom_call.1} parent=31 // pred_check_branch
          %229 = sbr.rel (%p227) target = $region44
        $region43: #{tpu_custom_call.1} parent=31 // pred_region
          %230 = dma.done [#allocation6], 128
        $region44: #{tpu_custom_call.1} parent=31 // pred_fallthru
          _
        %s231 = sand.u32 %s34, 1
        %s232 = scalar_lea.sflag [#allocation3], %s231
        %s233 = sand.u32 %s34, 1
        %s234 = smul.addr %s233, 8
        %s235 = scalar_lea.vmem [#allocation2], %s234
        %p236 = pneg %p47
        %p237 = pneg %p44
        %p238 = pneg %p68
        %p239 = pneg %p65
        %p240 = pneg %p89
        %p241 = pneg %p86
        %p242 = pneg %p115
        %p243 = pneg %p112
        %s244 = sand.u32 %s102, 1
        %s245 = scalar_lea.sflag [#allocation4], %s244
        %s246 = sand.u32 %s102, 1
        %s247 = smul.addr %s246, 16
        %s248 = scalar_lea.vmem [#allocation8], %s247
        %p249 = pneg %p141
        %p250 = pneg %p138
        %s251 = sand.u32 %s128, 1
        %s252 = scalar_lea.sflag [#allocation10], %s251
        %s253 = sand.u32 %s128, 1
        %s254 = smul.addr %s253, 16
        %s255 = scalar_lea.vmem [#allocation9], %s254
        %v257 = vld [vmem:[%s218] sm:$0xf]
        %v258 = vld [vmem:[%s218 + $0x4] sm:$0xf]
        %v259 = vld [vmem:[#allocation5] sm:$0xf]
        %v260 = vld [vmem:[#allocation5 + $0x4] sm:$0xf]
        %v263 = vunpack.c.l.b16 %v259
        %v264 = vunpack.c.l.b16 %v260
        %v265 = vpack.c.b16 %v264, %v263
        %v268 = vunpack.c.l.b16 %v257
        %v269 = vunpack.c.l.b16 %v258
        %v270 = vpack.c.b16 %v269, %v268
        %vm272 = vcmask 130048
        %v274 = vsel %vm272, %v265, 0
        %276 = vmatprep.subr.bf16.mxu0 0
        %277 = vmatpush1.bf16.msra.mxu0 0
        %278 = vmatprep.subr.bf16.mxu0 0
        %279 = vmatpush1.bf16.msra.mxu0 0
        %280 = vmatprep.subr.bf16.mxu0 0
        %281 = vmatpush1.bf16.msra.mxu0 0
        %282 = vmatprep.subr.bf16.mxu0 0
        %283 = vmatpush1.bf16.msra.mxu0 0
        %284 = vmatprep.subr.bf16.mxu0 0
        %285 = vmatpush1.bf16.msra.mxu0 0
        %286 = vmatprep.subr.bf16.mxu0 0
        %287 = vmatpush1.bf16.msra.mxu0 0
        %288 = vmatprep.subr.bf16.mxu0 0
        %289 = vmatpush1.bf16.msra.mxu0 0
        %290 = vmatprep.subr.bf16.mxu0 0
        %291 = vmatpush1.bf16.msra.mxu0 %v270
        %292 = vmatprep.subr.bf16.mxu0 0
        %293 = vmatpush2.bf16.msra.mxu0 0
        %294 = vmatprep.subr.bf16.mxu0 0
        %295 = vmatpush2.bf16.msra.mxu0 0
        %296 = vmatprep.subr.bf16.mxu0 0
        %297 = vmatpush2.bf16.msra.mxu0 0
        %298 = vmatprep.subr.bf16.mxu0 0
        %299 = vmatpush2.bf16.msra.mxu0 0
        %300 = vmatprep.subr.bf16.mxu0 0
        %301 = vmatpush2.bf16.msra.mxu0 0
        %302 = vmatprep.subr.bf16.mxu0 0
        %303 = vmatpush2.bf16.msra.mxu0 0
        %304 = vmatprep.subr.bf16.mxu0 0
        %305 = vmatpush2.bf16.msra.mxu0 0
        %306 = vmatprep.subr.bf16.mxu0 0
        %307 = vmatpush2.bf16.msra.mxu0 0
        %308 = vmatprep.mubr.bf16.mxu0 0
        %309 = vmatmul.mubr.bf16.gmra.mxu0 %v274
        %v310 = vpop.f32.mrf.mxu0
        %v311 = vadd.f32 0.0, %v310
        %v312 = vpop.f32.mrf.mxu0
        %v313 = vpop.f32.mrf.mxu0
        %v314 = vadd.f32 0.0, %v313
        %v315 = vpop.f32.mrf.mxu0
        %316 = vdwg.mxu0
        %v317 = vld [vmem:[#allocation7] sm:$0xf]
        %v318 = vld [vmem:[#allocation7 + $0x4] sm:$0xf]
        %v321 = vunpack.c.l.b16 %v317
        %v322 = vunpack.c.l.b16 %v318
        %v323 = vpack.c.b16 %v322, %v321
        %v326 = vsel %vm272, %v270, 0
        %328 = vmatprep.subr.bf16.mxu0 0
        %329 = vmatpush1.bf16.msra.mxu0 0
        %330 = vmatprep.subr.bf16.mxu0 0
        %331 = vmatpush1.bf16.msra.mxu0 0
        %332 = vmatprep.subr.bf16.mxu0 0
        %333 = vmatpush1.bf16.msra.mxu0 0
        %334 = vmatprep.subr.bf16.mxu0 0
        %335 = vmatpush1.bf16.msra.mxu0 0
        %336 = vmatprep.subr.bf16.mxu0 0
        %337 = vmatpush1.bf16.msra.mxu0 0
        %338 = vmatprep.subr.bf16.mxu0 0
        %339 = vmatpush1.bf16.msra.mxu0 0
        %340 = vmatprep.subr.bf16.mxu0 0
        %341 = vmatpush1.bf16.msra.mxu0 0
        %342 = vmatprep.subr.bf16.mxu0 0
        %343 = vmatpush1.bf16.msra.mxu0 %v323
        %344 = vmatprep.subr.bf16.mxu0 0
        %345 = vmatpush2.bf16.msra.mxu0 0
        %346 = vmatprep.subr.bf16.mxu0 0
        %347 = vmatpush2.bf16.msra.mxu0 0
        %348 = vmatprep.subr.bf16.mxu0 0
        %349 = vmatpush2.bf16.msra.mxu0 0
        %350 = vmatprep.subr.bf16.mxu0 0
        %351 = vmatpush2.bf16.msra.mxu0 0
        %352 = vmatprep.subr.bf16.mxu0 0
        %353 = vmatpush2.bf16.msra.mxu0 0
        %354 = vmatprep.subr.bf16.mxu0 0
        %355 = vmatpush2.bf16.msra.mxu0 0
        %356 = vmatprep.subr.bf16.mxu0 0
        %357 = vmatpush2.bf16.msra.mxu0 0
        %358 = vmatprep.subr.bf16.mxu0 0
        %359 = vmatpush2.bf16.msra.mxu0 0
        %360 = vmatprep.mubr.bf16.mxu0 0
        %361 = vmatmul.mubr.bf16.gmra.mxu0 %v326
        %v362 = vpop.f32.mrf.mxu0
        %v363 = vadd.f32 0.0, %v362
        %v364 = vpop.f32.mrf.mxu0
        %v365 = vpop.f32.mrf.mxu0
        %v366 = vadd.f32 0.0, %v365
        %v367 = vpop.f32.mrf.mxu0
        %368 = vdwg.mxu0
        %369 = vst.msk [vmem:[%s248] sm:$0xff] %vm272, %v311
        %370 = vst.msk [vmem:[%s248 + $0x8] sm:$0xff] %vm272, %v314
        %371 = vst.msk [vmem:[%s255] sm:$0xff] %vm272, %v363
        %372 = vst.msk [vmem:[%s255 + $0x8] sm:$0xff] %vm272, %v366
        %s373 = sand.u32 %s102, 1
        %s374 = scalar_lea.sflag [#allocation4], %s373
        %s375 = sand.u32 %s102, 1
        %s376 = smul.addr %s375, 16
        %s377 = scalar_lea.vmem [#allocation8], %s376
        %s378 = sand.u32 %s128, 1
        %s379 = scalar_lea.sflag [#allocation10], %s378
        %s380 = sand.u32 %s128, 1
        %s381 = smul.addr %s380, 16
        %s382 = scalar_lea.vmem [#allocation9], %s381
        // Predicated region
        $region45: #{tpu_custom_call.1} parent=31 // pred_check
          %p383 = pneg %p112
        $region46: #{tpu_custom_call.1} parent=31 // pred_check_branch
          %385 = sbr.rel (%p383) target = $region48
        $region47: #{tpu_custom_call.1} parent=31 // pred_region
          %s387 = ssub.s32 256, 256
          %388 = vsyncadd %s374, %s387
          %s389 = smul.addr %s26, 2
          %s390 = smul.addr %s389, 128
          %s391 = scalar_lea.hbm %s3, %s390
          %s392 = sshll.u32 %s377, 4
          %s393 = int_to_ptr.vmem [resolvable:$true] %s392
          %398 = dma.vmem_to_hbm [thread:$0]  %s393, 256, %s391, %s374, 128, 128, 8
        $region48: #{tpu_custom_call.1} parent=31 // pred_fallthru
          _
        // Predicated region
        $region49: #{tpu_custom_call.1} parent=31 // pred_check
          %p399 = pneg %p138
        $region50: #{tpu_custom_call.1} parent=31 // pred_check_branch
          %401 = sbr.rel (%p399) target = $region52
        $region51: #{tpu_custom_call.1} parent=31 // pred_region
          %s403 = ssub.s32 256, 256
          %404 = vsyncadd %s379, %s403
          %s405 = smul.addr %s26, 2
          %s406 = smul.addr %s405, 128
          %s407 = scalar_lea.hbm %s4, %s406
          %s408 = sshll.u32 %s382, 4
          %s409 = int_to_ptr.vmem [resolvable:$true] %s408
          %414 = dma.vmem_to_hbm [thread:$0]  %s409, 256, %s407, %s379, 128, 128, 8
        $region52: #{tpu_custom_call.1} parent=31 // pred_fallthru
          _
      $region32: #{tpu_custom_call.1} parent=5 // pred_fallthru
        _
      %p415 = scmp.le.s32.totalorder 2, %s21
      // Predicated region
      $region53: #{tpu_custom_call.1} parent=5 // pred_check
        %p416 = pneg %p415
      $region54: #{tpu_custom_call.1} parent=5 // pred_check_branch
        %418 = sbr.rel (%p416) target = $region56
      $region55: #{tpu_custom_call.1} parent=5 // pred_region
        %s419 = ssub.s32 %s21, 2
        // Predicated region
        $region57: #{tpu_custom_call.1} parent=55 // pred_check
          %p420 = pneg %p118
        $region58: #{tpu_custom_call.1} parent=55 // pred_check_branch
          %422 = sbr.rel (%p420) target = $region60
        $region59: #{tpu_custom_call.1} parent=55 // pred_region
          %s423 = sand.u32 %s103, 1
          %s424 = scalar_lea.sflag [#allocation4], %s423
          %s425 = sand.u32 %s103, 1
          %s426 = smul.addr %s425, 16
          %s427 = scalar_lea.vmem [#allocation8], %s426
          %428 = dma.done %s424, 256
        $region60: #{tpu_custom_call.1} parent=55 // pred_fallthru
          _
        // Predicated region
        $region61: #{tpu_custom_call.1} parent=55 // pred_check
          %p429 = pneg %p144
        $region62: #{tpu_custom_call.1} parent=55 // pred_check_branch
          %431 = sbr.rel (%p429) target = $region64
        $region63: #{tpu_custom_call.1} parent=55 // pred_region
          %s432 = sand.u32 %s129, 1
          %s433 = scalar_lea.sflag [#allocation10], %s432
          %s434 = sand.u32 %s129, 1
          %s435 = smul.addr %s434, 16
          %s436 = scalar_lea.vmem [#allocation9], %s435
          %437 = dma.done %s433, 256
        $region64: #{tpu_custom_call.1} parent=55 // pred_fallthru
          _
      $region56: #{tpu_custom_call.1} parent=5 // pred_fallthru
        _
    $region6: #{tpu_custom_call.1} parent=1 // loop_footer
      %s25 = sadd.s32 1, %s21
    $region7: #{tpu_custom_call.1} parent=1 // loop_footer_branch
      %20 = sbr.rel target = $region3
    $region8: #{tpu_custom_call.1} parent=1 // loop_exit
      _
    %438 = vsyncpa [#allocation3], 1
    %s439 = scalar_lea.sflag [#allocation3], 1
    %440 = vsyncpa %s439, 1
    %441 = vsyncpa [#allocation6], 1
    %442 = vsyncpa [#allocation4], 1
    %s443 = scalar_lea.sflag [#allocation4], 1
    %444 = vsyncpa %s443, 1
    %445 = vsyncpa [#allocation10], 1
    %s446 = scalar_lea.sflag [#allocation10], 1
    %447 = vsyncpa %s446, 1

</llo_original>
